<compile_context>
chip_gen: v7x
topology: tpu7x:2x2x1
jax: 0.10.0
libtpu: 0.0.40
codegen_flags: <defaults>
</compile_context>

<pallas_src>
import functools

import jax
import jax.numpy as jnp
from jax import lax
from jax.experimental import pallas as pl
from jax.experimental.pallas import tpu as pltpu


# ---------------------------------------------------------------------------
# Grid-constant parameter blocks: keep a single VMEM-resident copy (no double
# buffering).  Fall back to full-array blocks with a constant index_map if
# the backend rejects memory_space-only input specs.
# ---------------------------------------------------------------------------
_CONST_VMEM_OK = None


def _const_vmem_ok():
    global _CONST_VMEM_OK
    if _CONST_VMEM_OK is None:
        try:
            def _probe(w_ref, o_ref):
                o_ref[...] = w_ref[...] + 1.0

            out = pl.pallas_call(
                _probe,
                out_shape=jax.ShapeDtypeStruct((8, 128), jnp.float32),
                grid=(1,),
                in_specs=[pl.BlockSpec(memory_space=pltpu.MemorySpace.VMEM)],
                out_specs=pl.BlockSpec((8, 128), lambda i: (0, 0)),
            )(jnp.zeros((8, 128), jnp.float32))
            jax.block_until_ready(out)
            _CONST_VMEM_OK = True
        except Exception:
            _CONST_VMEM_OK = False
    return _CONST_VMEM_OK


def _const_spec(shape):
    """Spec for a parameter whose block index is constant across the grid."""
    if _const_vmem_ok():
        return pl.BlockSpec(memory_space=pltpu.MemorySpace.VMEM)
    return pl.BlockSpec(shape, lambda *_: (0,) * len(shape))


def _pick_block(n, target):
    """Largest block <= target dividing n (multiple of 8 when possible)."""
    if n <= target:
        return n
    for b in range(target, 0, -1):
        if n % b == 0 and (b % 8 == 0 or b < 8):
            return b
    return n


def _compiler_params(semantics, working_set_bytes):
    # Explicit scoped-VMEM budget (defaults are only 16/32 MiB); cap at 64 MiB
    # so the same tile plan also fits v7x's smaller physical VMEM.
    limit = int(min(max(2 * working_set_bytes + (4 << 20), 32 << 20), 64 << 20))
    return pltpu.CompilerParams(dimension_semantics=semantics,
                                vmem_limit_bytes=limit)


# ---------------------------------------------------------------------------
# Kernel 1: fused QKV projection (bf16 matmuls, f32 accumulation)
# ---------------------------------------------------------------------------
def _qkv_kernel(x_ref, wq_ref, wk_ref, wv_ref, bq_ref, bk_ref, bv_ref,
                q_ref, k_ref, v_ref):
    xb = x_ref[...].astype(jnp.bfloat16)                      # (br, D)

    def proj(w_ref, b_ref, o_ref):
        y = jnp.dot(xb, w_ref[...], preferred_element_type=jnp.float32)
        o_ref[...] = (y + b_ref[...]).astype(o_ref.dtype)

    proj(wq_ref, bq_ref, q_ref)
    proj(wk_ref, bk_ref, k_ref)
    proj(wv_ref, bv_ref, v_ref)


# ---------------------------------------------------------------------------
# Kernel 2: attention + output projection + residual + LayerNorm1
# ---------------------------------------------------------------------------
def _attn_kernel(num_heads, scale, eps,
                 q_ref, k_ref, v_ref, mask_ref, x_ref,
                 wo_ref, bo_ref, g1_ref, be1_ref, o_ref):
    D = q_ref.shape[-1]
    dk = D // num_heads

    # Additive mask bias computed once (hoisted out of the head loop).
    bias = jnp.where(mask_ref[...] == 0, -1e9, 0.0)           # (bq, S) f32

    attn = None
    for h in range(num_heads):                                # static unroll
        lo, hi = h * dk, (h + 1) * dk
        qh = q_ref[:, lo:hi]                                  # (bq, dk) bf16
        kh = k_ref[:, lo:hi]                                  # (S,  dk) bf16
        vh = v_ref[:, lo:hi]                                  # (S,  dk) bf16
        # Contract dk of both operands directly -- no explicit K transpose.
        s = lax.dot_general(qh, kh, (((1,), (1,)), ((), ())),
                            preferred_element_type=jnp.float32)
        s = s * scale + bias                                  # (bq, S) f32
        m = jnp.max(s, axis=-1, keepdims=True)
        p = jnp.exp(s - m)
        p = p * pl.reciprocal(jnp.sum(p, axis=-1, keepdims=True), approx=True)
        hout = jnp.dot(p.astype(jnp.bfloat16), vh,
                       preferred_element_type=jnp.float32)    # (bq, dk)
        # Fold the output projection into the head loop: no concat needed.
        contrib = jnp.dot(hout.astype(jnp.bfloat16), wo_ref[lo:hi, :],
                          preferred_element_type=jnp.float32)  # (bq, D)
        attn = contrib if attn is None else attn + contrib

    # TODO(synk): dropout is identity here (eval mode).
    y = x_ref[...] + attn + bo_ref[...]                       # residual, f32
    mu = jnp.mean(y, axis=-1, keepdims=True)
    var = jnp.mean(jnp.square(y - mu), axis=-1, keepdims=True)
    yn = (y - mu) * lax.rsqrt(var + eps)
    o_ref[...] = (yn * g1_ref[...] + be1_ref[...]).astype(o_ref.dtype)


# ---------------------------------------------------------------------------
# Kernel 3: FFN (tiled over d_ff with accumulator) + residual + LayerNorm2
# ---------------------------------------------------------------------------
def _ffn_kernel(eps, x_ref, w1_ref, b1_ref, w2_ref, b2_ref, g2_ref, be2_ref,
                o_ref, acc_ref):
    j = pl.program_id(2)

    @pl.when(j == 0)
    def _():
        acc_ref[...] = jnp.zeros_like(acc_ref)

    xb = x_ref[...].astype(jnp.bfloat16)                      # (br, D)
    h = jnp.dot(xb, w1_ref[...], preferred_element_type=jnp.float32)
    h = jnp.maximum(h + b1_ref[...], 0.0)                     # (br, bff)
    acc_ref[...] += jnp.dot(h.astype(jnp.bfloat16), w2_ref[...],
                            preferred_element_type=jnp.float32)

    @pl.when(j == pl.num_programs(2) - 1)
    def _():
        y = x_ref[...] + acc_ref[...] + b2_ref[...]           # residual, f32
        mu = jnp.mean(y, axis=-1, keepdims=True)
        var = jnp.mean(jnp.square(y - mu), axis=-1, keepdims=True)
        yn = (y - mu) * lax.rsqrt(var + eps)
        o_ref[...] = (yn * g2_ref[...] + be2_ref[...]).astype(o_ref.dtype)


# ---------------------------------------------------------------------------
# Wrapper
# ---------------------------------------------------------------------------
def encoder_layer(x, mask, params, *, num_heads, eps=1e-5,
                  block_rows=256, block_q=256, block_ff=512):
    """EncoderLayer forward. mask: (B, S, S), 1 = attend, 0 = masked."""
    # TODO(synk): training-mode dropout (RNG) not implemented; eval semantics.
    B, S, D = x.shape
    d_ff = params["w1"].shape[1]
    assert D % num_heads == 0
    dk = D // num_heads

    br = _pick_block(S, block_rows)      # row block for QKV / FFN
    bq = _pick_block(S, block_q)         # query block for attention
    bff = _pick_block(d_ff, block_ff)    # d_ff block for FFN

    f32, bf16 = jnp.float32, jnp.bfloat16

    # bf16 weights for the MXU (f32 accumulation in-kernel); biases, LayerNorm
    # params and the residual path stay f32.
    wq, wk, wv = (params[n].astype(bf16) for n in ("wq", "wk", "wv"))
    wo = params["wo"].astype(bf16)
    w1 = params["w1"].astype(bf16)
    w2 = params["w2"].astype(bf16)

    # int8 mask: 1 byte/element of HBM traffic instead of 4.
    mask_i8 = (mask != 0).astype(jnp.int8)

    # VMEM working-set estimates (bytes) for explicit scoped-VMEM limits.
    ws1 = 3 * D * D * 2 + 3 * D * 4 + br * D * 4 + 3 * br * D * 2
    ws2 = (D * D * 2 + 3 * D * 4 + 2 * S * D * 2 + bq * D * 2 + bq * S
           + 2 * bq * D * 4)
    ws3 = (3 * br * D * 4 + D * bff * 2 + bff * 4 + bff * D * 2 + 3 * D * 4)

    # -------- 1) fused QKV projection ---------------------------------------
    q, k, v = pl.pallas_call(
        _qkv_kernel,
        out_shape=(jax.ShapeDtypeStruct((B, S, D), bf16),) * 3,
        grid=(B, S // br),
        in_specs=[
            pl.BlockSpec((pl.Squeezed(), br, D), lambda b, r: (b, r, 0)),
            _const_spec((D, D)), _const_spec((D, D)), _const_spec((D, D)),
            _const_spec((1, D)), _const_spec((1, D)), _const_spec((1, D)),
        ],
        out_specs=[pl.BlockSpec((pl.Squeezed(), br, D),
                                lambda b, r: (b, r, 0))] * 3,
        compiler_params=_compiler_params(("parallel", "parallel"), ws1),
    )(x, wq, wk, wv, params["bq"], params["bk"], params["bv"])

    # -------- 2) attention + out-proj + residual + LayerNorm1 ---------------
    scale = 1.0 / (dk ** 0.5)
    attn_kernel = functools.partial(_attn_kernel, num_heads, scale, float(eps))
    x1 = pl.pallas_call(
        attn_kernel,
        out_shape=jax.ShapeDtypeStruct((B, S, D), f32),
        grid=(B, S // bq),
        in_specs=[
            pl.BlockSpec((pl.Squeezed(), bq, D), lambda b, i: (b, i, 0)),   # q
            pl.BlockSpec((pl.Squeezed(), S, D), lambda b, i: (b, 0, 0)),    # k
            pl.BlockSpec((pl.Squeezed(), S, D), lambda b, i: (b, 0, 0)),    # v
            pl.BlockSpec((pl.Squeezed(), bq, S), lambda b, i: (b, i, 0)),   # mask
            pl.BlockSpec((pl.Squeezed(), bq, D), lambda b, i: (b, i, 0)),   # x
            _const_spec((D, D)),                                            # Wo
            _const_spec((1, D)), _const_spec((1, D)), _const_spec((1, D)),  # bo,g1,be1
        ],
        out_specs=pl.BlockSpec((pl.Squeezed(), bq, D), lambda b, i: (b, i, 0)),
        compiler_params=_compiler_params(("parallel", "parallel"), ws2),
    )(q, k, v, mask_i8, x, wo, params["bo"], params["gamma1"], params["beta1"])

    # -------- 3) FFN + residual + LayerNorm2 --------------------------------
    ffn_kernel = functools.partial(_ffn_kernel, float(eps))
    out = pl.pallas_call(
        ffn_kernel,
        out_shape=jax.ShapeDtypeStruct((B, S, D), x.dtype),
        grid=(B, S // br, d_ff // bff),
        in_specs=[
            pl.BlockSpec((pl.Squeezed(), br, D), lambda b, r, j: (b, r, 0)),  # x1
            pl.BlockSpec((D, bff), lambda b, r, j: (0, j)),                   # W1 tile
            pl.BlockSpec((1, bff), lambda b, r, j: (0, j)),                   # b1 tile
            pl.BlockSpec((bff, D), lambda b, r, j: (j, 0)),                   # W2 tile
            _const_spec((1, D)), _const_spec((1, D)), _const_spec((1, D)),    # b2,g2,be2
        ],
        out_specs=pl.BlockSpec((pl.Squeezed(), br, D), lambda b, r, j: (b, r, 0)),
        scratch_shapes=[pltpu.VMEM((br, D), jnp.float32)],
        compiler_params=_compiler_params(("parallel", "parallel", "arbitrary"),
                                         ws3),
    )(x1, w1, params["b1"], w2, params["b2"], params["gamma2"], params["beta2"])
    return out


def init_params(key, d_model, d_ff):
    ks = jax.random.split(key, 6)
    s = 0.02
    return {
        "wq": jax.random.normal(ks[0], (d_model, d_model), jnp.float32) * s,
        "wk": jax.random.normal(ks[1], (d_model, d_model), jnp.float32) * s,
        "wv": jax.random.normal(ks[2], (d_model, d_model), jnp.float32) * s,
        "wo": jax.random.normal(ks[3], (d_model, d_model), jnp.float32) * s,
        "bq": jnp.zeros((1, d_model), jnp.float32),
        "bk": jnp.zeros((1, d_model), jnp.float32),
        "bv": jnp.zeros((1, d_model), jnp.float32),
        "bo": jnp.zeros((1, d_model), jnp.float32),
        "w1": jax.random.normal(ks[4], (d_model, d_ff), jnp.float32) * s,
        "b1": jnp.zeros((1, d_ff), jnp.float32),
        "w2": jax.random.normal(ks[5], (d_ff, d_model), jnp.float32) * s,
        "b2": jnp.zeros((1, d_model), jnp.float32),
        "gamma1": jnp.ones((1, d_model), jnp.float32),
        "beta1": jnp.zeros((1, d_model), jnp.float32),
        "gamma2": jnp.ones((1, d_model), jnp.float32),
        "beta2": jnp.zeros((1, d_model), jnp.float32),
    }


def _reference(x, mask, params, num_heads, eps=1e-5):
    B, S, D = x.shape
    dk = D // num_heads

    def lin(t, w, b):
        return t @ w + b

    def split(t):
        return t.reshape(B, S, num_heads, dk).transpose(0, 2, 1, 3)

    qh, kh, vh = (split(lin(x, params[w], params[b]))
                  for w, b in (("wq", "bq"), ("wk", "bk"), ("wv", "bv")))
    s = jnp.einsum("bhqd,bhkd->bhqk", qh, kh) / (dk ** 0.5)
    s = jnp.where(mask[:, None, :, :] == 0, -1e9, s)
    p = jax.nn.softmax(s, axis=-1)
    o = jnp.einsum("bhqk,bhkd->bhqd", p, vh).transpose(0, 2, 1, 3).reshape(B, S, D)
    attn = lin(o, params["wo"], params["bo"])

    def ln(t, g, b):
        mu = t.mean(-1, keepdims=True)
        var = ((t - mu) ** 2).mean(-1, keepdims=True)
        return (t - mu) / jnp.sqrt(var + eps) * g + b

    x1 = ln(x + attn, params["gamma1"], params["beta1"])
    ff = lin(jnp.maximum(lin(x1, params["w1"], params["b1"]), 0.0),
             params["w2"], params["b2"])
    return ln(x1 + ff, params["gamma2"], params["beta2"])


if __name__ == "__main__":
    B, S, d_model, num_heads, d_ff = 2, 16, 128, 4, 256

    key = jax.random.PRNGKey(0)
    kx, kp = jax.random.split(key)
    x = jax.random.normal(kx, (B, S, d_model), jnp.float32)
    # causal mask: 1 = attend, 0 = masked
    mask = jnp.tril(jnp.ones((S, S), jnp.float32))[None].repeat(B, axis=0)
    params = init_params(kp, d_model, d_ff)

    out = encoder_layer(x, mask, params, num_heads=num_heads)
    out = jax.block_until_ready(out)

    assert out.shape == (B, S, d_model)
    assert bool(jnp.all(jnp.isfinite(out)))
    ref = _reference(x, mask, params, num_heads)
    max_err = float(jnp.max(jnp.abs(out - ref)))
    assert max_err < 5e-2, f"max abs error {max_err}"
    print("KERNEL_OK")
</pallas_src>

<mosaic_0001>
module attributes {stable_mosaic.version = 11 : i64} {
  func.func @_probe(%arg0: i32, %arg1: memref<8x128xf32, #tpu.memory_space<vmem>>, %arg2: memref<8x128xf32, #tpu.memory_space<vmem>>) attributes {dimension_semantics = [#tpu.dimension_semantics<arbitrary>], iteration_bounds = array<i64: 1>, scalar_prefetch = 0 : i64, scratch_operands = 0 : i64, tpu.core_type = #tpu.core_type<tc>, window_params = [{pipeline_mode = #tpu.pipeline_mode<synchronous>, transform_indices = @transform_0, window_bounds = array<i64: 8, 128>}, {pipeline_mode = #tpu.pipeline_mode<synchronous>, transform_indices = @transform_1, window_bounds = array<i64: 8, 128>}]} {
    %c0 = arith.constant 0 : index
    %c0_0 = arith.constant 0 : index
    %0 = vector.load %arg1[%c0, %c0_0] : memref<8x128xf32, #tpu.memory_space<vmem>>, vector<8x128xf32>
    %cst = arith.constant 1.000000e+00 : f32
    %1 = vector.broadcast %cst : f32 to vector<8x128xf32>
    %2 = arith.addf %0, %1 : vector<8x128xf32>
    %c0_1 = arith.constant 0 : index
    %c0_2 = arith.constant 0 : index
    %3 = vector.load %arg2[%c0_1, %c0_2] : memref<8x128xf32, #tpu.memory_space<vmem>>, vector<8x128xf32>
    tpu.vector_store %arg2[%c0_1, %c0_2], %2 {strides = array<i32>} : memref<8x128xf32, #tpu.memory_space<vmem>>, vector<8x128xf32>,
    return
  }
  func.func @transform_0(%arg0: i32) -> (i32, i32) {
    %c0_i32 = arith.constant 0 : i32
    %c0_i32_0 = arith.constant 0 : i32
    %c0_i32_1 = arith.constant 0 : i32
    return %c0_i32, %c0_i32_0 : i32, i32
  }
  func.func @transform_1(%arg0: i32) -> (i32, i32) {
    %c0_i32 = arith.constant 0 : i32
    %c0_i32_0 = arith.constant 0 : i32
    %c0_i32_1 = arith.constant 0 : i32
    return %c0_i32, %c0_i32_0 : i32, i32
  }
}

module attributes {stable_mosaic.version = 11 : i64} {
  func.func @_qkv_kernel(%arg0: i32, %arg1: i32, %arg2: memref<1x16x128xf32, #tpu.memory_space<vmem>>, %arg3: memref<128x128xbf16, #tpu.memory_space<vmem>>, %arg4: memref<128x128xbf16, #tpu.memory_space<vmem>>, %arg5: memref<128x128xbf16, #tpu.memory_space<vmem>>, %arg6: memref<1x128xf32, #tpu.memory_space<vmem>>, %arg7: memref<1x128xf32, #tpu.memory_space<vmem>>, %arg8: memref<1x128xf32, #tpu.memory_space<vmem>>, %arg9: memref<1x16x128xbf16, #tpu.memory_space<vmem>>, %arg10: memref<1x16x128xbf16, #tpu.memory_space<vmem>>, %arg11: memref<1x16x128xbf16, #tpu.memory_space<vmem>>) attributes {dimension_semantics = [#tpu.dimension_semantics<parallel>, #tpu.dimension_semantics<parallel>], iteration_bounds = array<i64: 2, 1>, scalar_prefetch = 0 : i64, scratch_operands = 0 : i64, tpu.core_type = #tpu.core_type<tc>, window_params = [{transform_indices = @transform_0, window_bounds = array<i64: 1, 16, 128>}, {pipeline_mode = #tpu.pipeline_mode<synchronous>, transform_indices = @transform_1, window_bounds = array<i64: 128, 128>}, {pipeline_mode = #tpu.pipeline_mode<synchronous>, transform_indices = @transform_2, window_bounds = array<i64: 128, 128>}, {pipeline_mode = #tpu.pipeline_mode<synchronous>, transform_indices = @transform_3, window_bounds = array<i64: 128, 128>}, {pipeline_mode = #tpu.pipeline_mode<synchronous>, transform_indices = @transform_4, window_bounds = array<i64: 1, 128>}, {pipeline_mode = #tpu.pipeline_mode<synchronous>, transform_indices = @transform_5, window_bounds = array<i64: 1, 128>}, {pipeline_mode = #tpu.pipeline_mode<synchronous>, transform_indices = @transform_6, window_bounds = array<i64: 1, 128>}, {transform_indices = @transform_7, window_bounds = array<i64: 1, 16, 128>}, {transform_indices = @transform_8, window_bounds = array<i64: 1, 16, 128>}, {transform_indices = @transform_9, window_bounds = array<i64: 1, 16, 128>}]} {
    %c0 = arith.constant 0 : index
    %c0_0 = arith.constant 0 : index
    %c0_1 = arith.constant 0 : index
    %0 = vector.load %arg2[%c0, %c0_0, %c0_1] : memref<1x16x128xf32, #tpu.memory_space<vmem>>, vector<1x16x128xf32>
    %1 = vector.shape_cast %0 : vector<1x16x128xf32> to vector<16x128xf32>
    %2 = arith.truncf %1 : vector<16x128xf32> to vector<16x128xbf16>
    %c0_2 = arith.constant 0 : index
    %c0_3 = arith.constant 0 : index
    %3 = vector.load %arg3[%c0_2, %c0_3] : memref<128x128xbf16, #tpu.memory_space<vmem>>, vector<128x128xbf16>
    %cst = arith.constant dense<0.000000e+00> : vector<16x128xf32>
    %4 = tpu.matmul %2, %3, %cst {dimension_numbers = #tpu.dot_dimension_numbers<[1], [0], [0], [1], [0, 0, 1, 1], [], []>} : vector<16x128xbf16>, vector<128x128xbf16>, vector<16x128xf32> -> vector<16x128xf32>
    %c0_4 = arith.constant 0 : index
    %c0_5 = arith.constant 0 : index
    %5 = vector.load %arg6[%c0_4, %c0_5] : memref<1x128xf32, #tpu.memory_space<vmem>>, vector<1x128xf32>
    %6 = vector.broadcast %5 : vector<1x128xf32> to vector<16x128xf32>
    %7 = arith.addf %4, %6 : vector<16x128xf32>
    %8 = arith.truncf %7 : vector<16x128xf32> to vector<16x128xbf16>
    %c0_6 = arith.constant 0 : index
    %c0_7 = arith.constant 0 : index
    %c0_8 = arith.constant 0 : index
    %9 = vector.load %arg9[%c0_6, %c0_7, %c0_8] : memref<1x16x128xbf16, #tpu.memory_space<vmem>>, vector<1x16x128xbf16>
    %10 = vector.shape_cast %9 : vector<1x16x128xbf16> to vector<16x128xbf16>
    %11 = vector.shape_cast %8 : vector<16x128xbf16> to vector<1x16x128xbf16>
    tpu.vector_store %arg9[%c0_6, %c0_7, %c0_8], %11 {strides = array<i32>} : memref<1x16x128xbf16, #tpu.memory_space<vmem>>, vector<1x16x128xbf16>,
    %c0_9 = arith.constant 0 : index
    %c0_10 = arith.constant 0 : index
    %12 = vector.load %arg4[%c0_9, %c0_10] : memref<128x128xbf16, #tpu.memory_space<vmem>>, vector<128x128xbf16>
    %cst_11 = arith.constant dense<0.000000e+00> : vector<16x128xf32>
    %13 = tpu.matmul %2, %12, %cst_11 {dimension_numbers = #tpu.dot_dimension_numbers<[1], [0], [0], [1], [0, 0, 1, 1], [], []>} : vector<16x128xbf16>, vector<128x128xbf16>, vector<16x128xf32> -> vector<16x128xf32>
    %c0_12 = arith.constant 0 : index
    %c0_13 = arith.constant 0 : index
    %14 = vector.load %arg7[%c0_12, %c0_13] : memref<1x128xf32, #tpu.memory_space<vmem>>, vector<1x128xf32>
    %15 = vector.broadcast %14 : vector<1x128xf32> to vector<16x128xf32>
    %16 = arith.addf %13, %15 : vector<16x128xf32>
    %17 = arith.truncf %16 : vector<16x128xf32> to vector<16x128xbf16>
    %c0_14 = arith.constant 0 : index
    %c0_15 = arith.constant 0 : index
    %c0_16 = arith.constant 0 : index
    %18 = vector.load %arg10[%c0_14, %c0_15, %c0_16] : memref<1x16x128xbf16, #tpu.memory_space<vmem>>, vector<1x16x128xbf16>
    %19 = vector.shape_cast %18 : vector<1x16x128xbf16> to vector<16x128xbf16>
    %20 = vector.shape_cast %17 : vector<16x128xbf16> to vector<1x16x128xbf16>
    tpu.vector_store %arg10[%c0_14, %c0_15, %c0_16], %20 {strides = array<i32>} : memref<1x16x128xbf16, #tpu.memory_space<vmem>>, vector<1x16x128xbf16>,
    %c0_17 = arith.constant 0 : index
    %c0_18 = arith.constant 0 : index
    %21 = vector.load %arg5[%c0_17, %c0_18] : memref<128x128xbf16, #tpu.memory_space<vmem>>, vector<128x128xbf16>
    %cst_19 = arith.constant dense<0.000000e+00> : vector<16x128xf32>
    %22 = tpu.matmul %2, %21, %cst_19 {dimension_numbers = #tpu.dot_dimension_numbers<[1], [0], [0], [1], [0, 0, 1, 1], [], []>} : vector<16x128xbf16>, vector<128x128xbf16>, vector<16x128xf32> -> vector<16x128xf32>
    %c0_20 = arith.constant 0 : index
    %c0_21 = arith.constant 0 : index
    %23 = vector.load %arg8[%c0_20, %c0_21] : memref<1x128xf32, #tpu.memory_space<vmem>>, vector<1x128xf32>
    %24 = vector.broadcast %23 : vector<1x128xf32> to vector<16x128xf32>
    %25 = arith.addf %22, %24 : vector<16x128xf32>
    %26 = arith.truncf %25 : vector<16x128xf32> to vector<16x128xbf16>
    %c0_22 = arith.constant 0 : index
    %c0_23 = arith.constant 0 : index
    %c0_24 = arith.constant 0 : index
    %27 = vector.load %arg11[%c0_22, %c0_23, %c0_24] : memref<1x16x128xbf16, #tpu.memory_space<vmem>>, vector<1x16x128xbf16>
    %28 = vector.shape_cast %27 : vector<1x16x128xbf16> to vector<16x128xbf16>
    %29 = vector.shape_cast %26 : vector<16x128xbf16> to vector<1x16x128xbf16>
    tpu.vector_store %arg11[%c0_22, %c0_23, %c0_24], %29 {strides = array<i32>} : memref<1x16x128xbf16, #tpu.memory_space<vmem>>, vector<1x16x128xbf16>,
    return
  }
  func.func @transform_0(%arg0: i32, %arg1: i32) -> (i32, i32, i32) {
    %c0_i32 = arith.constant 0 : i32
    %c0_i32_0 = arith.constant 0 : i32
    return %arg0, %arg1, %c0_i32 : i32, i32, i32
  }
  func.func @transform_1(%arg0: i32, %arg1: i32) -> (i32, i32) {
    %c0_i32 = arith.constant 0 : i32
    %c0_i32_0 = arith.constant 0 : i32
    %c0_i32_1 = arith.constant 0 : i32
    return %c0_i32, %c0_i32_0 : i32, i32
  }
  func.func @transform_2(%arg0: i32, %arg1: i32) -> (i32, i32) {
    %c0_i32 = arith.constant 0 : i32
    %c0_i32_0 = arith.constant 0 : i32
    %c0_i32_1 = arith.constant 0 : i32
    return %c0_i32, %c0_i32_0 : i32, i32
  }
  func.func @transform_3(%arg0: i32, %arg1: i32) -> (i32, i32) {
    %c0_i32 = arith.constant 0 : i32
    %c0_i32_0 = arith.constant 0 : i32
    %c0_i32_1 = arith.constant 0 : i32
    return %c0_i32, %c0_i32_0 : i32, i32
  }
  func.func @transform_4(%arg0: i32, %arg1: i32) -> (i32, i32) {
    %c0_i32 = arith.constant 0 : i32
    %c0_i32_0 = arith.constant 0 : i32
    %c0_i32_1 = arith.constant 0 : i32
    return %c0_i32, %c0_i32_0 : i32, i32
  }
  func.func @transform_5(%arg0: i32, %arg1: i32) -> (i32, i32) {
    %c0_i32 = arith.constant 0 : i32
    %c0_i32_0 = arith.constant 0 : i32
    %c0_i32_1 = arith.constant 0 : i32
    return %c0_i32, %c0_i32_0 : i32, i32
  }
  func.func @transform_6(%arg0: i32, %arg1: i32) -> (i32, i32) {
    %c0_i32 = arith.constant 0 : i32
    %c0_i32_0 = arith.constant 0 : i32
    %c0_i32_1 = arith.constant 0 : i32
    return %c0_i32, %c0_i32_0 : i32, i32
  }
  func.func @transform_7(%arg0: i32, %arg1: i32) -> (i32, i32, i32) {
    %c0_i32 = arith.constant 0 : i32
    %c0_i32_0 = arith.constant 0 : i32
    return %arg0, %arg1, %c0_i32 : i32, i32, i32
  }
  func.func @transform_8(%arg0: i32, %arg1: i32) -> (i32, i32, i32) {
    %c0_i32 = arith.constant 0 : i32
    %c0_i32_0 = arith.constant 0 : i32
    return %arg0, %arg1, %c0_i32 : i32, i32, i32
  }
  func.func @transform_9(%arg0: i32, %arg1: i32) -> (i32, i32, i32) {
    %c0_i32 = arith.constant 0 : i32
    %c0_i32_0 = arith.constant 0 : i32
    return %arg0, %arg1, %c0_i32 : i32, i32, i32
  }
}

</mosaic_0001>

<llo_original>
// kernel: tpu_custom_call.1
$region0: #{tpu_custom_call.1}
  #allocation0 [shape = 'u32[]', space=smem, size = 0x4, offset = 0x4, fixed_abs, tag = 'smem constant byte address 0x4 - core index']
  #allocation1 [shape = 'u32[144,128]{1,0:T(1,128)}', space=vmem, size = 0x12000, scoped, tag = 'internal scratch']
  %s0 = inlined_call_operand.hbm [shape: f32[8,128], index: 0, kind: input, shape index: {}]
  %s1 = inlined_call_operand.hbm [shape: f32[8,128], index: 1, kind: output, shape index: {}]
  %s2 = sld [smem:[#allocation0]]
  $region18: #{tpu_custom_call.1} parent=0
    _
  %s4 = ssub.s32 1, %s2
  %s5 = scalar_select 0, %s4, %s2
  $region1: #{tpu_custom_call.1} parent=0
    #allocation2 [shape = 'u8[4096]{0}', space=vmem, size = 0x1000, scoped, tag = 'input window, operand 0, single buffered']
    #allocation3 [shape = 's32[1]{0}', space=sflag, size = 0x4, scoped, tag = 'scoped memory for tpu_custom_call.1']
    #allocation4 [shape = 's32[1]{0}', space=sflag, size = 0x4, scoped, tag = 'scoped memory for tpu_custom_call.1']
    #allocation5 [shape = 'u8[4096]{0}', space=vmem, size = 0x1000, scoped, tag = 'output window, operand 0, single buffered']
    %6 = vsyncpa [#allocation3], 0
    %7 = vsyncpa [#allocation4], 0
    // Predicated region
    $region2: #{tpu_custom_call.1} parent=1 // pred_check
      _
    $region3: #{tpu_custom_call.1} parent=1 // pred_check_branch
      %9 = sbr.rel (0) target = $region5
    $region4: #{tpu_custom_call.1} parent=1 // pred_region
      %s11 = ssub.s32 128, 128
      %12 = vsyncadd [#allocation3], %s11
      %s14 = sshll.u32 [#allocation2], 4
      %s15 = int_to_ptr.vmem [resolvable:$true] %s14
      %17 = dma.hbm_to_vmem [thread:$0]  %s0, 128, %s15, [#allocation3]
    $region5: #{tpu_custom_call.1} parent=1 // pred_fallthru
      _
    // Predicated region
    $region6: #{tpu_custom_call.1} parent=1 // pred_check
      _
    $region7: #{tpu_custom_call.1} parent=1 // pred_check_branch
      %19 = sbr.rel (0) target = $region9
    $region8: #{tpu_custom_call.1} parent=1 // pred_region
      %20 = dma.done [#allocation3], 128
    $region9: #{tpu_custom_call.1} parent=1 // pred_fallthru
      _
    %v21 = vld [vmem:[#allocation2] sm:$0xff]
    %v22 = vadd.f32 %v21, 1.0
    %23 = vst [vmem:[#allocation5] sm:$0xff] %v22
    // Predicated region
    $region10: #{tpu_custom_call.1} parent=1 // pred_check
      _
    $region11: #{tpu_custom_call.1} parent=1 // pred_check_branch
      %25 = sbr.rel (0) target = $region13
    $region12: #{tpu_custom_call.1} parent=1 // pred_region
      %s27 = ssub.s32 128, 128
      %28 = vsyncadd [#allocation4], %s27
      %s30 = sshll.u32 [#allocation5], 4
      %s31 = int_to_ptr.vmem [resolvable:$true] %s30
      %33 = dma.vmem_to_hbm [thread:$0]  %s31, 128, %s1, [#allocation4]
    $region13: #{tpu_custom_call.1} parent=1 // pred_fallthru
      _
    // Predicated region
    $region14: #{tpu_custom_call.1} parent=1 // pred_check
      _
    $region15: #{tpu_custom_call.1} parent=1 // pred_check_branch
      %35 = sbr.rel (0) target = $region17
    $region16: #{tpu_custom_call.1} parent=1 // pred_region
      %36 = dma.done [#allocation4], 128
    $region17: #{tpu_custom_call.1} parent=1 // pred_fallthru
      _
    %37 = vsyncpa [#allocation3], 1
    %38 = vsyncpa [#allocation4], 1

// kernel: tpu_custom_call.1
$region0: #{tpu_custom_call.1}
  #allocation0 [shape = 'u32[]', space=smem, size = 0x4, offset = 0x4, fixed_abs, tag = 'smem constant byte address 0x4 - core index']
  #allocation1 [shape = 'u32[144,128]{1,0:T(1,128)}', space=vmem, size = 0x12000, scoped, tag = 'internal scratch']
  %s0 = inlined_call_operand.hbm [shape: f32[2,16,128], index: 0, kind: input, shape index: {}]
  %s1 = inlined_call_operand.hbm [shape: bf16[128,128], index: 1, kind: input, shape index: {}]
  %s2 = inlined_call_operand.hbm [shape: bf16[128,128], index: 2, kind: input, shape index: {}]
  %s3 = inlined_call_operand.hbm [shape: bf16[128,128], index: 3, kind: input, shape index: {}]
  %s4 = inlined_call_operand.vmem [shape: f32[1,128], index: 4, kind: input, shape index: {}]
  %s5 = inlined_call_operand.vmem [shape: f32[1,128], index: 5, kind: input, shape index: {}]
  %s6 = inlined_call_operand.vmem [shape: f32[1,128], index: 6, kind: input, shape index: {}]
  %s7 = inlined_call_operand.hbm [shape: bf16[2,16,128], index: 7, kind: output, shape index: {0}]
  %s8 = inlined_call_operand.hbm [shape: bf16[2,16,128], index: 8, kind: output, shape index: {1}]
  %s9 = inlined_call_operand.hbm [shape: bf16[2,16,128], index: 9, kind: output, shape index: {2}]
  %10 = xla_tuple %s7, %s8, %s9
  %s11 = sld [smem:[#allocation0]]
  $region93: #{tpu_custom_call.1} parent=0
    _
  %s13 = ssub.s32 1, %s11
  %s14 = scalar_select 0, %s13, %s11
  $region1: #{tpu_custom_call.1} parent=0
    #allocation2 [shape = 'u8[16384]{0}', space=vmem, size = 0x4000, scoped, tag = 'input window, operand 0']
    #allocation3 [shape = 's32[2]{0}', space=sflag, size = 0x8, scoped, tag = 'scoped memory for tpu_custom_call.1']
    #allocation4 [shape = 's32[2]{0}', space=sflag, size = 0x8, scoped, tag = 'scoped memory for tpu_custom_call.1']
    #allocation5 [shape = 'u8[32768]{0}', space=vmem, size = 0x8000, scoped, tag = 'input window, operand 1, single buffered']
    #allocation6 [shape = 's32[1]{0}', space=sflag, size = 0x4, scoped, tag = 'scoped memory for tpu_custom_call.1']
    #allocation7 [shape = 'u8[32768]{0}', space=vmem, size = 0x8000, scoped, tag = 'input window, operand 2, single buffered']
    #allocation8 [shape = 'u8[32768]{0}', space=vmem, size = 0x8000, scoped, tag = 'input window, operand 3, single buffered']
    #allocation9 [shape = 's32[1]{0}', space=sflag, size = 0x4, scoped, tag = 'scoped memory for tpu_custom_call.1']
    #allocation10 [shape = 'u8[8192]{0}', space=vmem, size = 0x2000, scoped, tag = 'output window, operand 0']
    #allocation11 [shape = 'u8[8192]{0}', space=vmem, size = 0x2000, scoped, tag = 'output window, operand 1']
    #allocation12 [shape = 's32[2]{0}', space=sflag, size = 0x8, scoped, tag = 'scoped memory for tpu_custom_call.1']
    #allocation13 [shape = 'u8[8192]{0}', space=vmem, size = 0x2000, scoped, tag = 'output window, operand 2']
    %15 = vsyncpa [#allocation3], 0
    %s16 = scalar_lea.sflag [#allocation3], 1
    %17 = vsyncpa %s16, 0
    %18 = vsyncpa [#allocation6], 0
    %19 = vsyncpa [#allocation9], 0
    %20 = vsyncpa [#allocation4], 0
    %s21 = scalar_lea.sflag [#allocation4], 1
    %22 = vsyncpa %s21, 0
    %23 = vsyncpa [#allocation12], 0
    %s24 = scalar_lea.sflag [#allocation12], 1
    %25 = vsyncpa %s24, 0
    loop: start=0, step=1, limit=4
    $region2: #{tpu_custom_call.1} parent=1 // loop_pre_header
      _
    $region3: #{tpu_custom_call.1} parent=1 // loop_header
      %s27 = sphi 0, %s31
      %p28 = scmp.ge.s32.totalorder %s27, 4
      %s34 = sphi 0, %s46
      %s35 = sphi 0, %s42
      %s36 = sphi 0, %s34
      %s37 = sphi 0, %s35
      %s38 = sphi 0, %s36
      %s39 = sphi 0, %s37
      %s51 = sphi 0, %s53
      %s54 = sphi 0, %s51
      %s55 = sphi 0, %s54
      %s71 = sphi 0, %s55
      %s75 = sphi 0, %s75
      %s77 = sphi 0, %s75
      %s78 = sphi 0, %s77
      %s92 = sphi 0, %s78
      %s96 = sphi 0, %s96
      %s98 = sphi 0, %s96
      %s99 = sphi 0, %s98
      %s113 = sphi 0, %s99
      %s117 = sphi 0, %s117
      %s119 = sphi 0, %s117
      %s120 = sphi 0, %s119
      %s134 = sphi 0, %s120
      %s138 = sphi 0, %s138
      %s140 = sphi 0, %s138
      %s141 = sphi 0, %s140
      %s155 = sphi 0, %s141
      %s159 = sphi 0, %s159
      %s161 = sphi 0, %s159
      %s162 = sphi 0, %s161
      %s176 = sphi 0, %s162
      %s180 = sphi 0, %s180
      %s182 = sphi 0, %s180
      %s183 = sphi 0, %s182
      %s197 = sphi 0, %s183
      %s205 = sphi 0, %s207
      %s208 = sphi 0, %s205
      %s209 = sphi 0, %s208
      %s225 = sphi 0, %s209
      %s233 = sphi 0, %s235
      %s236 = sphi 0, %s233
      %s237 = sphi 0, %s236
      %s253 = sphi 0, %s237
      %s261 = sphi 0, %s263
      %s264 = sphi 0, %s261
      %s265 = sphi 0, %s264
      %s281 = sphi 0, %s265
    $region4: #{tpu_custom_call.1} parent=1 // loop_header_branch
      %30 = sbr.rel (%p28) target = $region8
    $region5: #{tpu_custom_call.1} parent=1 // loop_body
      %s32 = ssub.s32 %s27, 1
      %s33 = ssub.s32 %s27, 2
      %s40 = sadd.s32 1, %s35
      %p41 = scmp.ge.s32.totalorder %s40, 1
      %s42 = scalar_select %p41, 0, %s40
      %s43 = sadd.s32 1, %s34
      %s44 = scalar_select %p41, %s43, %s34
      %p45 = scmp.ge.s32.totalorder %s44, 2
      %s46 = scalar_select %p45, 0, %s44
      %s47 = ssub.s32 %s34, %s46
      %s48 = ssub.s32 %s35, %s42
      %s49 = sor.u32 %s47, %s48
      %p50 = scmp.eq.s32.totalorder %s49, 0
      %s52 = sadd.s32 %s51, 1
      %s53 = scalar_select %p50, %s51, %s52
      %p56 = pneg %p50
      %p57 = scmp.eq.s32.totalorder %s27, 1
      %p58 = por %p56, %p57
      %p59 = scmp.ne.s32.totalorder %s51, %s54
      %p60 = scmp.eq.s32.totalorder %s27, 0
      %p61 = por %p59, %p60
      %p62 = scmp.ne.s32.totalorder %s51, %s54
      %p63 = scmp.eq.s32.totalorder %s32, 1
      %p64 = por %p62, %p63
      %p65 = scmp.ne.s32.totalorder %s54, %s55
      %p66 = scmp.eq.s32.totalorder %s32, 0
      %p67 = por %p65, %p66
      %p68 = scmp.ne.s32.totalorder %s54, %s55
      %p69 = scmp.eq.s32.totalorder %s33, 1
      %p70 = por %p68, %p69
      %p72 = scmp.ne.s32.totalorder %s55, %s71
      %p73 = scmp.eq.s32.totalorder %s33, 0
      %p74 = por %p72, %p73
      %s76 = sadd.s32 %s75, 1
      %p79 = scmp.eq.s32.totalorder %s27, 1
      %p80 = scmp.ne.s32.totalorder %s75, %s77
      %p81 = scmp.eq.s32.totalorder %s27, 0
      %p82 = por %p80, %p81
      %p83 = scmp.ne.s32.totalorder %s75, %s77
      %p84 = scmp.eq.s32.totalorder %s32, 1
      %p85 = por %p83, %p84
      %p86 = scmp.ne.s32.totalorder %s77, %s78
      %p87 = scmp.eq.s32.totalorder %s32, 0
      %p88 = por %p86, %p87
      %p89 = scmp.ne.s32.totalorder %s77, %s78
      %p90 = scmp.eq.s32.totalorder %s33, 1
      %p91 = por %p89, %p90
      %p93 = scmp.ne.s32.totalorder %s78, %s92
      %p94 = scmp.eq.s32.totalorder %s33, 0
      %p95 = por %p93, %p94
      %s97 = sadd.s32 %s96, 1
      %p100 = scmp.eq.s32.totalorder %s27, 1
      %p101 = scmp.ne.s32.totalorder %s96, %s98
      %p102 = scmp.eq.s32.totalorder %s27, 0
      %p103 = por %p101, %p102
      %p104 = scmp.ne.s32.totalorder %s96, %s98
      %p105 = scmp.eq.s32.totalorder %s32, 1
      %p106 = por %p104, %p105
      %p107 = scmp.ne.s32.totalorder %s98, %s99
      %p108 = scmp.eq.s32.totalorder %s32, 0
      %p109 = por %p107, %p108
      %p110 = scmp.ne.s32.totalorder %s98, %s99
      %p111 = scmp.eq.s32.totalorder %s33, 1
      %p112 = por %p110, %p111
      %p114 = scmp.ne.s32.totalorder %s99, %s113
      %p115 = scmp.eq.s32.totalorder %s33, 0
      %p116 = por %p114, %p115
      %s118 = sadd.s32 %s117, 1
      %p121 = scmp.eq.s32.totalorder %s27, 1
      %p122 = scmp.ne.s32.totalorder %s117, %s119
      %p123 = scmp.eq.s32.totalorder %s27, 0
      %p124 = por %p122, %p123
      %p125 = scmp.ne.s32.totalorder %s117, %s119
      %p126 = scmp.eq.s32.totalorder %s32, 1
      %p127 = por %p125, %p126
      %p128 = scmp.ne.s32.totalorder %s119, %s120
      %p129 = scmp.eq.s32.totalorder %s32, 0
      %p130 = por %p128, %p129
      %p131 = scmp.ne.s32.totalorder %s119, %s120
      %p132 = scmp.eq.s32.totalorder %s33, 1
      %p133 = por %p131, %p132
      %p135 = scmp.ne.s32.totalorder %s120, %s134
      %p136 = scmp.eq.s32.totalorder %s33, 0
      %p137 = por %p135, %p136
      %s139 = sadd.s32 %s138, 1
      %p142 = scmp.eq.s32.totalorder %s27, 1
      %p143 = scmp.ne.s32.totalorder %s138, %s140
      %p144 = scmp.eq.s32.totalorder %s27, 0
      %p145 = por %p143, %p144
      %p146 = scmp.ne.s32.totalorder %s138, %s140
      %p147 = scmp.eq.s32.totalorder %s32, 1
      %p148 = por %p146, %p147
      %p149 = scmp.ne.s32.totalorder %s140, %s141
      %p150 = scmp.eq.s32.totalorder %s32, 0
      %p151 = por %p149, %p150
      %p152 = scmp.ne.s32.totalorder %s140, %s141
      %p153 = scmp.eq.s32.totalorder %s33, 1
      %p154 = por %p152, %p153
      %p156 = scmp.ne.s32.totalorder %s141, %s155
      %p157 = scmp.eq.s32.totalorder %s33, 0
      %p158 = por %p156, %p157
      %s160 = sadd.s32 %s159, 1
      %p163 = scmp.eq.s32.totalorder %s27, 1
      %p164 = scmp.ne.s32.totalorder %s159, %s161
      %p165 = scmp.eq.s32.totalorder %s27, 0
      %p166 = por %p164, %p165
      %p167 = scmp.ne.s32.totalorder %s159, %s161
      %p168 = scmp.eq.s32.totalorder %s32, 1
      %p169 = por %p167, %p168
      %p170 = scmp.ne.s32.totalorder %s161, %s162
      %p171 = scmp.eq.s32.totalorder %s32, 0
      %p172 = por %p170, %p171
      %p173 = scmp.ne.s32.totalorder %s161, %s162
      %p174 = scmp.eq.s32.totalorder %s33, 1
      %p175 = por %p173, %p174
      %p177 = scmp.ne.s32.totalorder %s162, %s176
      %p178 = scmp.eq.s32.totalorder %s33, 0
      %p179 = por %p177, %p178
      %s181 = sadd.s32 %s180, 1
      %p184 = scmp.eq.s32.totalorder %s27, 1
      %p185 = scmp.ne.s32.totalorder %s180, %s182
      %p186 = scmp.eq.s32.totalorder %s27, 0
      %p187 = por %p185, %p186
      %p188 = scmp.ne.s32.totalorder %s180, %s182
      %p189 = scmp.eq.s32.totalorder %s32, 1
      %p190 = por %p188, %p189
      %p191 = scmp.ne.s32.totalorder %s182, %s183
      %p192 = scmp.eq.s32.totalorder %s32, 0
      %p193 = por %p191, %p192
      %p194 = scmp.ne.s32.totalorder %s182, %s183
      %p195 = scmp.eq.s32.totalorder %s33, 1
      %p196 = por %p194, %p195
      %p198 = scmp.ne.s32.totalorder %s183, %s197
      %p199 = scmp.eq.s32.totalorder %s33, 0
      %p200 = por %p198, %p199
      %s201 = ssub.s32 %s34, %s46
      %s202 = ssub.s32 %s35, %s42
      %s203 = sor.u32 %s201, %s202
      %p204 = scmp.eq.s32.totalorder %s203, 0
      %s206 = sadd.s32 %s205, 1
      %s207 = scalar_select %p204, %s205, %s206
      %p210 = pneg %p204
      %p211 = scmp.eq.s32.totalorder %s27, 1
      %p212 = por %p210, %p211
      %p213 = scmp.ne.s32.totalorder %s205, %s208
      %p214 = scmp.eq.s32.totalorder %s27, 0
      %p215 = por %p213, %p214
      %p216 = scmp.ne.s32.totalorder %s205, %s208
      %p217 = scmp.eq.s32.totalorder %s32, 1
      %p218 = por %p216, %p217
      %p219 = scmp.ne.s32.totalorder %s208, %s209
      %p220 = scmp.eq.s32.totalorder %s32, 0
      %p221 = por %p219, %p220
      %p222 = scmp.ne.s32.totalorder %s208, %s209
      %p223 = scmp.eq.s32.totalorder %s33, 1
      %p224 = por %p222, %p223
      %p226 = scmp.ne.s32.totalorder %s209, %s225
      %p227 = scmp.eq.s32.totalorder %s33, 0
      %p228 = por %p226, %p227
      %s229 = ssub.s32 %s34, %s46
      %s230 = ssub.s32 %s35, %s42
      %s231 = sor.u32 %s229, %s230
      %p232 = scmp.eq.s32.totalorder %s231, 0
      %s234 = sadd.s32 %s233, 1
      %s235 = scalar_select %p232, %s233, %s234
      %p238 = pneg %p232
      %p239 = scmp.eq.s32.totalorder %s27, 1
      %p240 = por %p238, %p239
      %p241 = scmp.ne.s32.totalorder %s233, %s236
      %p242 = scmp.eq.s32.totalorder %s27, 0
      %p243 = por %p241, %p242
      %p244 = scmp.ne.s32.totalorder %s233, %s236
      %p245 = scmp.eq.s32.totalorder %s32, 1
      %p246 = por %p244, %p245
      %p247 = scmp.ne.s32.totalorder %s236, %s237
      %p248 = scmp.eq.s32.totalorder %s32, 0
      %p249 = por %p247, %p248
      %p250 = scmp.ne.s32.totalorder %s236, %s237
      %p251 = scmp.eq.s32.totalorder %s33, 1
      %p252 = por %p250, %p251
      %p254 = scmp.ne.s32.totalorder %s237, %s253
      %p255 = scmp.eq.s32.totalorder %s33, 0
      %p256 = por %p254, %p255
      %s257 = ssub.s32 %s34, %s46
      %s258 = ssub.s32 %s35, %s42
      %s259 = sor.u32 %s257, %s258
      %p260 = scmp.eq.s32.totalorder %s259, 0
      %s262 = sadd.s32 %s261, 1
      %s263 = scalar_select %p260, %s261, %s262
      %p266 = pneg %p260
      %p267 = scmp.eq.s32.totalorder %s27, 1
      %p268 = por %p266, %p267
      %p269 = scmp.ne.s32.totalorder %s261, %s264
      %p270 = scmp.eq.s32.totalorder %s27, 0
      %p271 = por %p269, %p270
      %p272 = scmp.ne.s32.totalorder %s261, %s264
      %p273 = scmp.eq.s32.totalorder %s32, 1
      %p274 = por %p272, %p273
      %p275 = scmp.ne.s32.totalorder %s264, %s265
      %p276 = scmp.eq.s32.totalorder %s32, 0
      %p277 = por %p275, %p276
      %p278 = scmp.ne.s32.totalorder %s264, %s265
      %p279 = scmp.eq.s32.totalorder %s33, 1
      %p280 = por %p278, %p279
      %p282 = scmp.ne.s32.totalorder %s265, %s281
      %p283 = scmp.eq.s32.totalorder %s33, 0
      %p284 = por %p282, %p283
      %p285 = scmp.le.s32.totalorder 1, %s27
      %p286 = scmp.lt.s32.totalorder %s27, 3
      %p287 = pnand %p285, %p286
      %p288 = pneg %p287
      // Predicated region
      $region9: #{tpu_custom_call.1} parent=5 // pred_check
        _
      $region10: #{tpu_custom_call.1} parent=5 // pred_check_branch
        %290 = sbr.rel (%p287) target = $region12
      $region11: #{tpu_custom_call.1} parent=5 // pred_region
        %s291 = ssub.s32 %s27, 1
        // Predicated region
        $region13: #{tpu_custom_call.1} parent=11 // pred_check
          %p292 = pneg %p88
        $region14: #{tpu_custom_call.1} parent=11 // pred_check_branch
          %294 = sbr.rel (%p292) target = $region16
        $region15: #{tpu_custom_call.1} parent=11 // pred_region
          %s296 = ssub.s32 1024, 1024
          %297 = vsyncadd [#allocation6], %s296
          %s298 = sshll.u32 [#allocation5], 4
          %s299 = int_to_ptr.vmem [resolvable:$true] %s298
          %304 = dma.hbm_to_vmem [thread:$0]  %s1, 1024, %s299, [#allocation6], 64, 64, 4
        $region16: #{tpu_custom_call.1} parent=11 // pred_fallthru
          _
        // Predicated region
        $region17: #{tpu_custom_call.1} parent=11 // pred_check
          %p305 = pneg %p109
        $region18: #{tpu_custom_call.1} parent=11 // pred_check_branch
          %307 = sbr.rel (%p305) target = $region20
        $region19: #{tpu_custom_call.1} parent=11 // pred_region
          %s309 = ssub.s32 1024, 1024
          %310 = vsyncadd [#allocation6], %s309
          %s311 = sshll.u32 [#allocation7], 4
          %s312 = int_to_ptr.vmem [resolvable:$true] %s311
          %317 = dma.hbm_to_vmem [thread:$0]  %s2, 1024, %s312, [#allocation6], 64, 64, 4
        $region20: #{tpu_custom_call.1} parent=11 // pred_fallthru
          _
        // Predicated region
        $region21: #{tpu_custom_call.1} parent=11 // pred_check
          %p318 = pneg %p130
        $region22: #{tpu_custom_call.1} parent=11 // pred_check_branch
          %320 = sbr.rel (%p318) target = $region24
        $region23: #{tpu_custom_call.1} parent=11 // pred_region
          %s322 = ssub.s32 1024, 1024
          %323 = vsyncadd [#allocation9], %s322
          %s324 = sshll.u32 [#allocation8], 4
          %s325 = int_to_ptr.vmem [resolvable:$true] %s324
          %330 = dma.hbm_to_vmem [thread:$0]  %s3, 1024, %s325, [#allocation9], 64, 64, 4
        $region24: #{tpu_custom_call.1} parent=11 // pred_fallthru
          _
        // Predicated region
        $region25: #{tpu_custom_call.1} parent=11 // pred_check
          %p331 = pneg %p151
        $region26: #{tpu_custom_call.1} parent=11 // pred_check_branch
          %333 = sbr.rel (%p331) target = $region28
        $region27: #{tpu_custom_call.1} parent=11 // pred_region
          _
        $region28: #{tpu_custom_call.1} parent=11 // pred_fallthru
          _
        // Predicated region
        $region29: #{tpu_custom_call.1} parent=11 // pred_check
          %p334 = pneg %p172
        $region30: #{tpu_custom_call.1} parent=11 // pred_check_branch
          %336 = sbr.rel (%p334) target = $region32
        $region31: #{tpu_custom_call.1} parent=11 // pred_region
          _
        $region32: #{tpu_custom_call.1} parent=11 // pred_fallthru
          _
        // Predicated region
        $region33: #{tpu_custom_call.1} parent=11 // pred_check
          %p337 = pneg %p193
        $region34: #{tpu_custom_call.1} parent=11 // pred_check_branch
          %339 = sbr.rel (%p337) target = $region36
        $region35: #{tpu_custom_call.1} parent=11 // pred_region
          _
        $region36: #{tpu_custom_call.1} parent=11 // pred_fallthru
          _
      $region12: #{tpu_custom_call.1} parent=5 // pred_fallthru
        _
      %p340 = scmp.lt.s32.totalorder %s27, 2
      // Predicated region
      $region37: #{tpu_custom_call.1} parent=5 // pred_check
        %p341 = pneg %p340
      $region38: #{tpu_custom_call.1} parent=5 // pred_check_branch
        %343 = sbr.rel (%p341) target = $region40
      $region39: #{tpu_custom_call.1} parent=5 // pred_region
        // Predicated region
        $region41: #{tpu_custom_call.1} parent=39 // pred_check
          %p344 = pneg %p61
        $region42: #{tpu_custom_call.1} parent=39 // pred_check_branch
          %346 = sbr.rel (%p344) target = $region44
        $region43: #{tpu_custom_call.1} parent=39 // pred_region
          %s347 = sand.u32 %s51, 1
          %s348 = scalar_lea.sflag [#allocation3], %s347
          %s349 = sand.u32 %s51, 1
          %s350 = smul.addr %s349, 16
          %s351 = scalar_lea.vmem [#allocation2], %s350
          %s352 = smul.u32 2, %s35
          %s354 = ssub.s32 256, 256
          %355 = vsyncadd %s348, %s354
          %s356 = smul.addr %s34, 2
          %s357 = sadd.s32 %s352, %s356
          %s358 = smul.addr %s357, 128
          %s359 = scalar_lea.hbm %s0, %s358
          %s360 = sshll.u32 %s351, 4
          %s361 = int_to_ptr.vmem [resolvable:$true] %s360
          %366 = dma.hbm_to_vmem [thread:$0]  %s359, 256, %s361, %s348, 128, 128, 8
        $region44: #{tpu_custom_call.1} parent=39 // pred_fallthru
          _
      $region40: #{tpu_custom_call.1} parent=5 // pred_fallthru
        _
      %p367 = scmp.le.s32.totalorder 1, %s27
      %p368 = scmp.lt.s32.totalorder %s27, 3
      %p369 = pnand %p367, %p368
      %p370 = pneg %p369
      // Predicated region
      $region45: #{tpu_custom_call.1} parent=5 // pred_check
        _
      $region46: #{tpu_custom_call.1} parent=5 // pred_check_branch
        %372 = sbr.rel (%p369) target = $region48
      $region47: #{tpu_custom_call.1} parent=5 // pred_region
        %s373 = ssub.s32 %s27, 1
        %s374 = sand.u32 %s54, 1
        %s375 = scalar_lea.sflag [#allocation3], %s374
        %s376 = sand.u32 %s54, 1
        %s377 = smul.addr %s376, 16
        %s378 = scalar_lea.vmem [#allocation2], %s377
        // Predicated region
        $region49: #{tpu_custom_call.1} parent=47 // pred_check
          %p379 = pneg %p67
        $region50: #{tpu_custom_call.1} parent=47 // pred_check_branch
          %381 = sbr.rel (%p379) target = $region52
        $region51: #{tpu_custom_call.1} parent=47 // pred_region
          %382 = dma.done %s375, 256
        $region52: #{tpu_custom_call.1} parent=47 // pred_fallthru
          _
        // Predicated region
        $region53: #{tpu_custom_call.1} parent=47 // pred_check
          %p383 = pneg %p88
        $region54: #{tpu_custom_call.1} parent=47 // pred_check_branch
          %385 = sbr.rel (%p383) target = $region56
        $region55: #{tpu_custom_call.1} parent=47 // pred_region
          %386 = dma.done [#allocation6], 1024
        $region56: #{tpu_custom_call.1} parent=47 // pred_fallthru
          _
        // Predicated region
        $region57: #{tpu_custom_call.1} parent=47 // pred_check
          %p387 = pneg %p109
        $region58: #{tpu_custom_call.1} parent=47 // pred_check_branch
          %389 = sbr.rel (%p387) target = $region60
        $region59: #{tpu_custom_call.1} parent=47 // pred_region
          %390 = dma.done [#allocation6], 1024
        $region60: #{tpu_custom_call.1} parent=47 // pred_fallthru
          _
        // Predicated region
        $region61: #{tpu_custom_call.1} parent=47 // pred_check
          %p391 = pneg %p130
        $region62: #{tpu_custom_call.1} parent=47 // pred_check_branch
          %393 = sbr.rel (%p391) target = $region64
        $region63: #{tpu_custom_call.1} parent=47 // pred_region
          %394 = dma.done [#allocation9], 1024
        $region64: #{tpu_custom_call.1} parent=47 // pred_fallthru
          _
        %s395 = sand.u32 %s54, 1
        %s396 = scalar_lea.sflag [#allocation3], %s395
        %s397 = sand.u32 %s54, 1
        %s398 = smul.addr %s397, 16
        %s399 = scalar_lea.vmem [#allocation2], %s398
        %p400 = pneg %p67
        %p401 = pneg %p64
        %p402 = pneg %p88
        %p403 = pneg %p85
        %p404 = pneg %p109
        %p405 = pneg %p106
        %p406 = pneg %p130
        %p407 = pneg %p127
        %p408 = pneg %p151
        %p409 = pneg %p148
        %p410 = pneg %p172
        %p411 = pneg %p169
        %p412 = pneg %p193
        %p413 = pneg %p190
        %p414 = pneg %p221
        %p415 = pneg %p218
        %s416 = sand.u32 %s208, 1
        %s417 = scalar_lea.sflag [#allocation4], %s416
        %s418 = sand.u32 %s208, 1
        %s419 = smul.addr %s418, 8
        %s420 = scalar_lea.vmem [#allocation10], %s419
        %p421 = pneg %p249
        %p422 = pneg %p246
        %s423 = sand.u32 %s32, 1
        %s424 = scalar_lea.sflag [#allocation12], %s423
        %s425 = sand.u32 %s236, 1
        %s426 = smul.addr %s425, 8
        %s427 = scalar_lea.vmem [#allocation11], %s426
        %p428 = pneg %p277
        %p429 = pneg %p274
        %s430 = sand.u32 %s32, 1
        %s431 = scalar_lea.sflag [#allocation12], %s430
        %s432 = sand.u32 %s264, 1
        %s433 = smul.addr %s432, 8
        %s434 = scalar_lea.vmem [#allocation13], %s433
        %s435 = smul.u32 2, %s37
        %s436 = smul.u32 2, %s37
        %s437 = smul.u32 2, %s37
        %s438 = smul.u32 2, %s37
        %v440 = vld [vmem:[%s378] sm:$0xff]
        %v441 = vld [vmem:[%s378 + $0x8] sm:$0xff]
        %v442 = vpack.c.bf16 %v441, %v440
        %v443 = vld [vmem:[#allocation5] sm:$0xf]
        %v444 = vld [vmem:[#allocation5 + $0x4] sm:$0xf]
        %v445 = vld [vmem:[#allocation5 + $0x8] sm:$0xf]
        %v446 = vld [vmem:[#allocation5 + $0xc] sm:$0xf]
        %v447 = vld [vmem:[#allocation5 + $0x10] sm:$0xf]
        %v448 = vld [vmem:[#allocation5 + $0x14] sm:$0xf]
        %v449 = vld [vmem:[#allocation5 + $0x18] sm:$0xf]
        %v450 = vld [vmem:[#allocation5 + $0x1c] sm:$0xf]
        %v451 = vld [vmem:[#allocation5 + $0x20] sm:$0xf]
        %v452 = vld [vmem:[#allocation5 + $0x24] sm:$0xf]
        %v453 = vld [vmem:[#allocation5 + $0x28] sm:$0xf]
        %v454 = vld [vmem:[#allocation5 + $0x2c] sm:$0xf]
        %v455 = vld [vmem:[#allocation5 + $0x30] sm:$0xf]
        %v456 = vld [vmem:[#allocation5 + $0x34] sm:$0xf]
        %v457 = vld [vmem:[#allocation5 + $0x38] sm:$0xf]
        %v458 = vld [vmem:[#allocation5 + $0x3c] sm:$0xf]
        %v459 = vld [vmem:[%s4] sm:$0x1]
        %v461 = vlaneseq
        %v462 = vshrl.u32 %v461, 7
        %v463 = vsub.s32 0, %v462
        %v464 = vrot.slane %v459, %v463
        %v482 = vunpack.c.l.b16 %v443
        %v483 = vunpack.c.l.b16 %v444
        %v484 = vunpack.c.l.b16 %v445
        %v485 = vunpack.c.l.b16 %v446
        %v486 = vunpack.c.l.b16 %v447
        %v487 = vunpack.c.l.b16 %v448
        %v488 = vunpack.c.l.b16 %v449
        %v489 = vunpack.c.l.b16 %v450
        %v490 = vunpack.c.l.b16 %v451
        %v491 = vunpack.c.l.b16 %v452
        %v492 = vunpack.c.l.b16 %v453
        %v493 = vunpack.c.l.b16 %v454
        %v494 = vunpack.c.l.b16 %v455
        %v495 = vunpack.c.l.b16 %v456
        %v496 = vunpack.c.l.b16 %v457
        %v497 = vunpack.c.l.b16 %v458
        %v498 = vpack.c.b16 %v483, %v482
        %v499 = vpack.c.b16 %v485, %v484
        %v500 = vpack.c.b16 %v487, %v486
        %v501 = vpack.c.b16 %v489, %v488
        %v502 = vpack.c.b16 %v491, %v490
        %v503 = vpack.c.b16 %v493, %v492
        %v504 = vpack.c.b16 %v495, %v494
        %v505 = vpack.c.b16 %v497, %v496
        %514 = vmatprep.subr.bf16.mxu0 0
        %515 = vmatpush1.bf16.msra.mxu0 %v498
        %516 = vmatprep.subr.bf16.mxu0 0
        %517 = vmatpush1.bf16.msra.mxu0 %v499
        %518 = vmatprep.subr.bf16.mxu0 0
        %519 = vmatpush1.bf16.msra.mxu0 %v500
        %520 = vmatprep.subr.bf16.mxu0 0
        %521 = vmatpush1.bf16.msra.mxu0 %v501
        %522 = vmatprep.subr.bf16.mxu0 0
        %523 = vmatpush1.bf16.msra.mxu0 %v502
        %524 = vmatprep.subr.bf16.mxu0 0
        %525 = vmatpush1.bf16.msra.mxu0 %v503
        %526 = vmatprep.subr.bf16.mxu0 0
        %527 = vmatpush1.bf16.msra.mxu0 %v504
        %528 = vmatprep.subr.bf16.mxu0 0
        %529 = vmatpush1.bf16.msra.mxu0 %v505
        %530 = vmatprep.subr.bf16.mxu0 0
        %531 = vmatpush1.bf16.msra.mxu0 0
        %532 = vmatprep.subr.bf16.mxu0 0
        %533 = vmatpush1.bf16.msra.mxu0 0
        %534 = vmatprep.subr.bf16.mxu0 0
        %535 = vmatpush1.bf16.msra.mxu0 0
        %536 = vmatprep.subr.bf16.mxu0 0
        %537 = vmatpush1.bf16.msra.mxu0 0
        %538 = vmatprep.subr.bf16.mxu0 0
        %539 = vmatpush1.bf16.msra.mxu0 0
        %540 = vmatprep.subr.bf16.mxu0 0
        %541 = vmatpush1.bf16.msra.mxu0 0
        %542 = vmatprep.subr.bf16.mxu0 0
        %543 = vmatpush1.bf16.msra.mxu0 0
        %544 = vmatprep.subr.bf16.mxu0 0
        %545 = vmatpush1.bf16.msra.mxu0 0
        %546 = vmatprep.mubr.bf16.mxu0 0
        %547 = vmatmul.mubr.bf16.gmra.mrb[0].mxu0 %v442
        %v548 = vpop.f32.mrb[0].mxu0
        %v549 = vadd.f32 %v464, %v548
        %v550 = vpop.f32.mrb[0].mxu0
        %v551 = vpop.f32.mrb[0].mxu0
        %v552 = vadd.f32 %v464, %v551
        %v553 = vpop.f32.mrb[0].mxu0
        %554 = vdwg.mxu0
        %v555 = vpack.c.bf16 %v552, %v549
        %v557 = vunpack.c.l.b16 %v555
        %v558 = vunpack.c.h.b16 %v555
        %v559 = vpack.c.b16 %v557, %v557
        %v560 = vpack.c.b16 %v558, %v558
        %563 = vst [vmem:[%s420] sm:$0xf] %v559
        %564 = vst [vmem:[%s420 + $0x4] sm:$0xf] %v560
        %v565 = vld [vmem:[#allocation7] sm:$0xf]
        %v566 = vld [vmem:[#allocation7 + $0x4] sm:$0xf]
        %v567 = vld [vmem:[#allocation7 + $0x8] sm:$0xf]
        %v568 = vld [vmem:[#allocation7 + $0xc] sm:$0xf]
        %v569 = vld [vmem:[#allocation7 + $0x10] sm:$0xf]
        %v570 = vld [vmem:[#allocation7 + $0x14] sm:$0xf]
        %v571 = vld [vmem:[#allocation7 + $0x18] sm:$0xf]
        %v572 = vld [vmem:[#allocation7 + $0x1c] sm:$0xf]
        %v573 = vld [vmem:[#allocation7 + $0x20] sm:$0xf]
        %v574 = vld [vmem:[#allocation7 + $0x24] sm:$0xf]
        %v575 = vld [vmem:[#allocation7 + $0x28] sm:$0xf]
        %v576 = vld [vmem:[#allocation7 + $0x2c] sm:$0xf]
        %v577 = vld [vmem:[#allocation7 + $0x30] sm:$0xf]
        %v578 = vld [vmem:[#allocation7 + $0x34] sm:$0xf]
        %v579 = vld [vmem:[#allocation7 + $0x38] sm:$0xf]
        %v580 = vld [vmem:[#allocation7 + $0x3c] sm:$0xf]
        %v581 = vld [vmem:[%s5] sm:$0x1]
        %v583 = vlaneseq
        %v584 = vshrl.u32 %v583, 7
        %v585 = vsub.s32 0, %v584
        %v586 = vrot.slane %v581, %v585
        %v604 = vunpack.c.l.b16 %v565
        %v605 = vunpack.c.l.b16 %v566
        %v606 = vunpack.c.l.b16 %v567
        %v607 = vunpack.c.l.b16 %v568
        %v608 = vunpack.c.l.b16 %v569
        %v609 = vunpack.c.l.b16 %v570
        %v610 = vunpack.c.l.b16 %v571
        %v611 = vunpack.c.l.b16 %v572
        %v612 = vunpack.c.l.b16 %v573
        %v613 = vunpack.c.l.b16 %v574
        %v614 = vunpack.c.l.b16 %v575
        %v615 = vunpack.c.l.b16 %v576
        %v616 = vunpack.c.l.b16 %v577
        %v617 = vunpack.c.l.b16 %v578
        %v618 = vunpack.c.l.b16 %v579
        %v619 = vunpack.c.l.b16 %v580
        %v620 = vpack.c.b16 %v605, %v604
        %v621 = vpack.c.b16 %v607, %v606
        %v622 = vpack.c.b16 %v609, %v608
        %v623 = vpack.c.b16 %v611, %v610
        %v624 = vpack.c.b16 %v613, %v612
        %v625 = vpack.c.b16 %v615, %v614
        %v626 = vpack.c.b16 %v617, %v616
        %v627 = vpack.c.b16 %v619, %v618
        %636 = vmatprep.subr.bf16.mxu0 0
        %637 = vmatpush1.bf16.msra.mxu0 %v620
        %638 = vmatprep.subr.bf16.mxu0 0
        %639 = vmatpush1.bf16.msra.mxu0 %v621
        %640 = vmatprep.subr.bf16.mxu0 0
        %641 = vmatpush1.bf16.msra.mxu0 %v622
        %642 = vmatprep.subr.bf16.mxu0 0
        %643 = vmatpush1.bf16.msra.mxu0 %v623
        %644 = vmatprep.subr.bf16.mxu0 0
        %645 = vmatpush1.bf16.msra.mxu0 %v624
        %646 = vmatprep.subr.bf16.mxu0 0
        %647 = vmatpush1.bf16.msra.mxu0 %v625
        %648 = vmatprep.subr.bf16.mxu0 0
        %649 = vmatpush1.bf16.msra.mxu0 %v626
        %650 = vmatprep.subr.bf16.mxu0 0
        %651 = vmatpush1.bf16.msra.mxu0 %v627
        %652 = vmatprep.subr.bf16.mxu0 0
        %653 = vmatpush1.bf16.msra.mxu0 0
        %654 = vmatprep.subr.bf16.mxu0 0
        %655 = vmatpush1.bf16.msra.mxu0 0
        %656 = vmatprep.subr.bf16.mxu0 0
        %657 = vmatpush1.bf16.msra.mxu0 0
        %658 = vmatprep.subr.bf16.mxu0 0
        %659 = vmatpush1.bf16.msra.mxu0 0
        %660 = vmatprep.subr.bf16.mxu0 0
        %661 = vmatpush1.bf16.msra.mxu0 0
        %662 = vmatprep.subr.bf16.mxu0 0
        %663 = vmatpush1.bf16.msra.mxu0 0
        %664 = vmatprep.subr.bf16.mxu0 0
        %665 = vmatpush1.bf16.msra.mxu0 0
        %666 = vmatprep.subr.bf16.mxu0 0
        %667 = vmatpush1.bf16.msra.mxu0 0
        %668 = vmatprep.mubr.bf16.mxu0 0
        %669 = vmatmul.mubr.bf16.gmra.mrb[0].mxu0 %v442
        %v670 = vpop.f32.mrb[0].mxu0
        %v671 = vadd.f32 %v586, %v670
        %v672 = vpop.f32.mrb[0].mxu0
        %v673 = vpop.f32.mrb[0].mxu0
        %v674 = vadd.f32 %v586, %v673
        %v675 = vpop.f32.mrb[0].mxu0
        %676 = vdwg.mxu0
        %v677 = vpack.c.bf16 %v674, %v671
        %v679 = vunpack.c.l.b16 %v677
        %v680 = vunpack.c.h.b16 %v677
        %v681 = vpack.c.b16 %v679, %v679
        %v682 = vpack.c.b16 %v680, %v680
        %685 = vst [vmem:[%s427] sm:$0xf] %v681
        %686 = vst [vmem:[%s427 + $0x4] sm:$0xf] %v682
        %v687 = vld [vmem:[#allocation8] sm:$0xf]
        %v688 = vld [vmem:[#allocation8 + $0x4] sm:$0xf]
        %v689 = vld [vmem:[#allocation8 + $0x8] sm:$0xf]
        %v690 = vld [vmem:[#allocation8 + $0xc] sm:$0xf]
        %v691 = vld [vmem:[#allocation8 + $0x10] sm:$0xf]
        %v692 = vld [vmem:[#allocation8 + $0x14] sm:$0xf]
        %v693 = vld [vmem:[#allocation8 + $0x18] sm:$0xf]
        %v694 = vld [vmem:[#allocation8 + $0x1c] sm:$0xf]
        %v695 = vld [vmem:[#allocation8 + $0x20] sm:$0xf]
        %v696 = vld [vmem:[#allocation8 + $0x24] sm:$0xf]
        %v697 = vld [vmem:[#allocation8 + $0x28] sm:$0xf]
        %v698 = vld [vmem:[#allocation8 + $0x2c] sm:$0xf]
        %v699 = vld [vmem:[#allocation8 + $0x30] sm:$0xf]
        %v700 = vld [vmem:[#allocation8 + $0x34] sm:$0xf]
        %v701 = vld [vmem:[#allocation8 + $0x38] sm:$0xf]
        %v702 = vld [vmem:[#allocation8 + $0x3c] sm:$0xf]
        %v703 = vld [vmem:[%s6] sm:$0x1]
        %v705 = vlaneseq
        %v706 = vshrl.u32 %v705, 7
        %v707 = vsub.s32 0, %v706
        %v708 = vrot.slane %v703, %v707
        %v726 = vunpack.c.l.b16 %v687
        %v727 = vunpack.c.l.b16 %v688
        %v728 = vunpack.c.l.b16 %v689
        %v729 = vunpack.c.l.b16 %v690
        %v730 = vunpack.c.l.b16 %v691
        %v731 = vunpack.c.l.b16 %v692
        %v732 = vunpack.c.l.b16 %v693
        %v733 = vunpack.c.l.b16 %v694
        %v734 = vunpack.c.l.b16 %v695
        %v735 = vunpack.c.l.b16 %v696
        %v736 = vunpack.c.l.b16 %v697
        %v737 = vunpack.c.l.b16 %v698
        %v738 = vunpack.c.l.b16 %v699
        %v739 = vunpack.c.l.b16 %v700
        %v740 = vunpack.c.l.b16 %v701
        %v741 = vunpack.c.l.b16 %v702
        %v742 = vpack.c.b16 %v727, %v726
        %v743 = vpack.c.b16 %v729, %v728
        %v744 = vpack.c.b16 %v731, %v730
        %v745 = vpack.c.b16 %v733, %v732
        %v746 = vpack.c.b16 %v735, %v734
        %v747 = vpack.c.b16 %v737, %v736
        %v748 = vpack.c.b16 %v739, %v738
        %v749 = vpack.c.b16 %v741, %v740
        %758 = vmatprep.subr.bf16.mxu0 0
        %759 = vmatpush1.bf16.msra.mxu0 %v742
        %760 = vmatprep.subr.bf16.mxu0 0
        %761 = vmatpush1.bf16.msra.mxu0 %v743
        %762 = vmatprep.subr.bf16.mxu0 0
        %763 = vmatpush1.bf16.msra.mxu0 %v744
        %764 = vmatprep.subr.bf16.mxu0 0
        %765 = vmatpush1.bf16.msra.mxu0 %v745
        %766 = vmatprep.subr.bf16.mxu0 0
        %767 = vmatpush1.bf16.msra.mxu0 %v746
        %768 = vmatprep.subr.bf16.mxu0 0
        %769 = vmatpush1.bf16.msra.mxu0 %v747
        %770 = vmatprep.subr.bf16.mxu0 0
        %771 = vmatpush1.bf16.msra.mxu0 %v748
        %772 = vmatprep.subr.bf16.mxu0 0
        %773 = vmatpush1.bf16.msra.mxu0 %v749
        %774 = vmatprep.subr.bf16.mxu0 0
        %775 = vmatpush1.bf16.msra.mxu0 0
        %776 = vmatprep.subr.bf16.mxu0 0
        %777 = vmatpush1.bf16.msra.mxu0 0
        %778 = vmatprep.subr.bf16.mxu0 0
        %779 = vmatpush1.bf16.msra.mxu0 0
        %780 = vmatprep.subr.bf16.mxu0 0
        %781 = vmatpush1.bf16.msra.mxu0 0
        %782 = vmatprep.subr.bf16.mxu0 0
        %783 = vmatpush1.bf16.msra.mxu0 0
        %784 = vmatprep.subr.bf16.mxu0 0
        %785 = vmatpush1.bf16.msra.mxu0 0
        %786 = vmatprep.subr.bf16.mxu0 0
        %787 = vmatpush1.bf16.msra.mxu0 0
        %788 = vmatprep.subr.bf16.mxu0 0
        %789 = vmatpush1.bf16.msra.mxu0 0
        %790 = vmatprep.mubr.bf16.mxu0 0
        %791 = vmatmul.mubr.bf16.gmra.mrb[0].mxu0 %v442
        %v792 = vpop.f32.mrb[0].mxu0
        %v793 = vadd.f32 %v708, %v792
        %v794 = vpop.f32.mrb[0].mxu0
        %v795 = vpop.f32.mrb[0].mxu0
        %v796 = vadd.f32 %v708, %v795
        %v797 = vpop.f32.mrb[0].mxu0
        %798 = vdwg.mxu0
        %v799 = vpack.c.bf16 %v796, %v793
        %v801 = vunpack.c.l.b16 %v799
        %v802 = vunpack.c.h.b16 %v799
        %v803 = vpack.c.b16 %v801, %v801
        %v804 = vpack.c.b16 %v802, %v802
        %807 = vst [vmem:[%s434] sm:$0xf] %v803
        %808 = vst [vmem:[%s434 + $0x4] sm:$0xf] %v804
        %s809 = sand.u32 %s208, 1
        %s810 = scalar_lea.sflag [#allocation4], %s809
        %s811 = sand.u32 %s208, 1
        %s812 = smul.addr %s811, 8
        %s813 = scalar_lea.vmem [#allocation10], %s812
        %s814 = sand.u32 %s32, 1
        %s815 = scalar_lea.sflag [#allocation12], %s814
        %s816 = sand.u32 %s236, 1
        %s817 = smul.addr %s816, 8
        %s818 = scalar_lea.vmem [#allocation11], %s817
        %s819 = sand.u32 %s32, 1
        %s820 = scalar_lea.sflag [#allocation12], %s819
        %s821 = sand.u32 %s264, 1
        %s822 = smul.addr %s821, 8
        %s823 = scalar_lea.vmem [#allocation13], %s822
        // Predicated region
        $region65: #{tpu_custom_call.1} parent=47 // pred_check
          %p824 = pneg %p218
        $region66: #{tpu_custom_call.1} parent=47 // pred_check_branch
          %826 = sbr.rel (%p824) target = $region68
        $region67: #{tpu_custom_call.1} parent=47 // pred_region
          %s827 = smul.u32 2, %s37
          %s829 = ssub.s32 128, 128
          %830 = vsyncadd %s810, %s829
          %s831 = smul.addr %s36, 2
          %s832 = sadd.s32 %s827, %s831
          %s833 = smul.addr %s832, 64
          %s834 = scalar_lea.hbm %s7, %s833
          %s835 = sshll.u32 %s813, 4
          %s836 = int_to_ptr.vmem [resolvable:$true] %s835
          %841 = dma.vmem_to_hbm [thread:$0]  %s836, 128, %s834, %s810, 64, 64, 4
        $region68: #{tpu_custom_call.1} parent=47 // pred_fallthru
          _
        // Predicated region
        $region69: #{tpu_custom_call.1} parent=47 // pred_check
          %p842 = pneg %p246
        $region70: #{tpu_custom_call.1} parent=47 // pred_check_branch
          %844 = sbr.rel (%p842) target = $region72
        $region71: #{tpu_custom_call.1} parent=47 // pred_region
          %s845 = smul.u32 2, %s37
          %s847 = ssub.s32 128, 128
          %848 = vsyncadd %s815, %s847
          %s849 = smul.addr %s36, 2
          %s850 = sadd.s32 %s845, %s849
          %s851 = smul.addr %s850, 64
          %s852 = scalar_lea.hbm %s8, %s851
          %s853 = sshll.u32 %s818, 4
          %s854 = int_to_ptr.vmem [resolvable:$true] %s853
          %859 = dma.vmem_to_hbm [thread:$0]  %s854, 128, %s852, %s815, 64, 64, 4
        $region72: #{tpu_custom_call.1} parent=47 // pred_fallthru
          _
        // Predicated region
        $region73: #{tpu_custom_call.1} parent=47 // pred_check
          %p860 = pneg %p274
        $region74: #{tpu_custom_call.1} parent=47 // pred_check_branch
          %862 = sbr.rel (%p860) target = $region76
        $region75: #{tpu_custom_call.1} parent=47 // pred_region
          %s863 = smul.u32 2, %s37
          %s865 = ssub.s32 128, 128
          %866 = vsyncadd %s820, %s865
          %s867 = smul.addr %s36, 2
          %s868 = sadd.s32 %s863, %s867
          %s869 = smul.addr %s868, 64
          %s870 = scalar_lea.hbm %s9, %s869
          %s871 = sshll.u32 %s823, 4
          %s872 = int_to_ptr.vmem [resolvable:$true] %s871
          %877 = dma.vmem_to_hbm [thread:$0]  %s872, 128, %s870, %s820, 64, 64, 4
        $region76: #{tpu_custom_call.1} parent=47 // pred_fallthru
          _
      $region48: #{tpu_custom_call.1} parent=5 // pred_fallthru
        _
      %p878 = scmp.le.s32.totalorder 2, %s27
      // Predicated region
      $region77: #{tpu_custom_call.1} parent=5 // pred_check
        %p879 = pneg %p878
      $region78: #{tpu_custom_call.1} parent=5 // pred_check_branch
        %881 = sbr.rel (%p879) target = $region80
      $region79: #{tpu_custom_call.1} parent=5 // pred_region
        %s882 = ssub.s32 %s27, 2
        // Predicated region
        $region81: #{tpu_custom_call.1} parent=79 // pred_check
          %p883 = pneg %p224
        $region82: #{tpu_custom_call.1} parent=79 // pred_check_branch
          %885 = sbr.rel (%p883) target = $region84
        $region83: #{tpu_custom_call.1} parent=79 // pred_region
          %s886 = sand.u32 %s209, 1
          %s887 = scalar_lea.sflag [#allocation4], %s886
          %s888 = sand.u32 %s209, 1
          %s889 = smul.addr %s888, 8
          %s890 = scalar_lea.vmem [#allocation10], %s889
          %891 = dma.done %s887, 128
        $region84: #{tpu_custom_call.1} parent=79 // pred_fallthru
          _
        // Predicated region
        $region85: #{tpu_custom_call.1} parent=79 // pred_check
          %p892 = pneg %p252
        $region86: #{tpu_custom_call.1} parent=79 // pred_check_branch
          %894 = sbr.rel (%p892) target = $region88
        $region87: #{tpu_custom_call.1} parent=79 // pred_region
          %s895 = sand.u32 %s33, 1
          %s896 = scalar_lea.sflag [#allocation12], %s895
          %s897 = sand.u32 %s237, 1
          %s898 = smul.addr %s897, 8
          %s899 = scalar_lea.vmem [#allocation11], %s898
          %900 = dma.done %s896, 128
        $region88: #{tpu_custom_call.1} parent=79 // pred_fallthru
          _
        // Predicated region
        $region89: #{tpu_custom_call.1} parent=79 // pred_check
          %p901 = pneg %p280
        $region90: #{tpu_custom_call.1} parent=79 // pred_check_branch
          %903 = sbr.rel (%p901) target = $region92
        $region91: #{tpu_custom_call.1} parent=79 // pred_region
          %s904 = sand.u32 %s33, 1
          %s905 = scalar_lea.sflag [#allocation12], %s904
          %s906 = sand.u32 %s265, 1
          %s907 = smul.addr %s906, 8
          %s908 = scalar_lea.vmem [#allocation13], %s907
          %909 = dma.done %s905, 128
        $region92: #{tpu_custom_call.1} parent=79 // pred_fallthru
          _
      $region80: #{tpu_custom_call.1} parent=5 // pred_fallthru
        _
    $region6: #{tpu_custom_call.1} parent=1 // loop_footer
      %s31 = sadd.s32 1, %s27
    $region7: #{tpu_custom_call.1} parent=1 // loop_footer_branch
      %26 = sbr.rel target = $region3
    $region8: #{tpu_custom_call.1} parent=1 // loop_exit
      _
    %910 = vsyncpa [#allocation3], 1
    %s911 = scalar_lea.sflag [#allocation3], 1
    %912 = vsyncpa %s911, 1
    %913 = vsyncpa [#allocation6], 1
    %914 = vsyncpa [#allocation9], 1
    %915 = vsyncpa [#allocation4], 1
    %s916 = scalar_lea.sflag [#allocation4], 1
    %917 = vsyncpa %s916, 1
    %918 = vsyncpa [#allocation12], 1
    %s919 = scalar_lea.sflag [#allocation12], 1
    %920 = vsyncpa %s919, 1

</llo_original>
